<compile_context>
chip_gen: v6e
topology: v6e:2x2x1
jax: 0.10.0
libtpu: 0.0.40
codegen_flags: <defaults>
</compile_context>

<pallas_src>
import functools

import jax
import jax.numpy as jnp
from jax.experimental import pallas as pl
from jax.experimental.pallas import tpu as pltpu


def _vi_kernel(x_hat_ref, x_ref, mu_ref, logvar_ref, out_ref, *, binary_x):
    """Per-sample ELBO term (recon log-likelihood minus KL) for one batch tile."""
    eps = 1e-8

    x_hat = x_hat_ref[...].astype(jnp.float32)   # [tb, D]
    x = x_ref[...].astype(jnp.float32)           # [tb, D]

    if binary_x:
        # x in {0,1}: one EUP log + a VPU select (exactly equal to the two-log
        # form for binary targets, half the transcendental work).
        ll_elem = jnp.log(jnp.where(x > 0.5, x_hat, 1.0 - x_hat) + eps)
    else:
        ll_elem = x * jnp.log(x_hat + eps) + (1.0 - x) * jnp.log(1.0 - x_hat + eps)
    log_likelihood = jnp.sum(ll_elem, axis=-1, keepdims=True)  # [tb, 1]

    mu = mu_ref[...].astype(jnp.float32)          # [tb, L]
    logvar = logvar_ref[...].astype(jnp.float32)  # [tb, L]
    kl = jnp.sum(-0.5 * (1.0 + logvar - mu * mu - jnp.exp(logvar)),
                 axis=-1, keepdims=True)          # [tb, 1]

    out_ref[...] = log_likelihood - kl


def variational_inference(x_hat, x, mu, logvar, *, binary_x=False,
                          tb_max=512, vmem_budget_bytes=24 * 1024 * 1024):
    """Pallas forward of VariationalInference. Returns a scalar (f32)."""
    B = x_hat.shape[0]
    x_hat2 = x_hat.reshape(B, -1)
    x2 = x.reshape(B, -1)
    mu2 = mu.reshape(B, -1)
    logvar2 = logvar.reshape(B, -1)
    D = x_hat2.shape[1]
    L = mu2.shape[1]

    # Bytes of HBM traffic per batch row (inputs + 4B output).
    bytes_per_row = (D * (x_hat2.dtype.itemsize + x2.dtype.itemsize)
                     + L * (mu2.dtype.itemsize + logvar2.dtype.itemsize) + 4)

    # Largest batch tile (multiple of 8) whose double-buffered inputs fit the
    # VMEM budget; cap at tb_max so large batches keep a grid of >=2 steps
    # (lets dimension_semantics=("parallel",) shard across v7x's 2 TensorCores).
    tb = int(min(tb_max, max(8, vmem_budget_bytes // (2 * bytes_per_row))))
    tb = max(8, (tb // 8) * 8)
    tb = min(tb, ((B + 7) // 8) * 8)          # never tile past the (padded) batch
    b_pad = ((B + tb - 1) // tb) * tb

    def _pad_rows(a, fill):
        if b_pad == B:
            return a
        pad = jnp.full((b_pad - B,) + a.shape[1:], fill, dtype=a.dtype)
        return jnp.concatenate([a, pad], axis=0)

    x_hat_p = _pad_rows(x_hat2, 0.5)   # 0.5 keeps both log branches finite
    x_p = _pad_rows(x2, 0)
    mu_p = _pad_rows(mu2, 0)
    logvar_p = _pad_rows(logvar2, 0)   # KL(0, 0) == 0 for padded rows

    grid = (b_pad // tb,)
    # Explicit scoped-VMEM limit sized to the chosen tile (headroom for
    # double-buffering + output), kept well under v7x's 64 MiB physical VMEM.
    vmem_limit = int(min(max(4 * tb * bytes_per_row + (2 << 20), 16 << 20), 48 << 20))

    per_sample = pl.pallas_call(
        functools.partial(_vi_kernel, binary_x=binary_x),
        out_shape=jax.ShapeDtypeStruct((b_pad, 1), jnp.float32),
        grid_spec=pltpu.PrefetchScalarGridSpec(
            num_scalar_prefetch=0,
            grid=grid,
            in_specs=[
                pl.BlockSpec((tb, D), lambda i: (i, 0)),
                pl.BlockSpec((tb, D), lambda i: (i, 0)),
                pl.BlockSpec((tb, L), lambda i: (i, 0)),
                pl.BlockSpec((tb, L), lambda i: (i, 0)),
            ],
            out_specs=pl.BlockSpec((tb, 1), lambda i: (i, 0)),
        ),
        compiler_params=pltpu.CompilerParams(
            dimension_semantics=("parallel",),
            vmem_limit_bytes=vmem_limit,
        ),
    )(x_hat_p, x_p, mu_p, logvar_p)

    per_sample = per_sample[:B, 0]
    # forward = mean(recon LL) - KL_div, with KL_div = batch-mean of per-sample KL
    #         = mean_b (LL_b - KL_b)
    return jnp.mean(per_sample)


def _reference(x_hat, x, mu, logvar):
    eps = 1e-8
    B = x_hat.shape[0]
    xh = x_hat.reshape(B, -1).astype(jnp.float32)
    xx = x.reshape(B, -1).astype(jnp.float32)
    ll = jnp.sum(xx * jnp.log(xh + eps) + (1.0 - xx) * jnp.log(1.0 - xh + eps), axis=-1)
    kl = jnp.sum(-0.5 * (1.0 + logvar - mu * mu - jnp.exp(logvar)), axis=-1)
    return jnp.mean(ll) - jnp.mean(kl)


if __name__ == "__main__":
    B, C, H, W, L = 16, 1, 16, 16, 32

    key = jax.random.PRNGKey(0)
    k1, k2, k3, k4 = jax.random.split(key, 4)

    # Reconstruction probabilities in (0,1), binary targets, Gaussian posteriors.
    x_hat = jax.nn.sigmoid(jax.random.normal(k1, (B, C, H, W), dtype=jnp.float32))
    x = (jax.random.uniform(k2, (B, C, H, W)) > 0.5).astype(jnp.float32)
    mu = jax.random.normal(k3, (B, L), dtype=jnp.float32)
    logvar = 0.1 * jax.random.normal(k4, (B, L), dtype=jnp.float32)

    out = variational_inference(x_hat, x, mu, logvar, binary_x=True)
    out = jax.block_until_ready(out)

    ref = _reference(x_hat, x, mu, logvar)
    assert out.shape == ()
    assert jnp.allclose(out, ref, rtol=1e-5, atol=1e-4), (out, ref)

    print("KERNEL_OK")
</pallas_src>

<mosaic_0001>
module attributes {stable_mosaic.version = 11 : i64} {
  func.func @_vi_kernel(%arg0: i32, %arg1: memref<16x256xf32, #tpu.memory_space<vmem>>, %arg2: memref<16x256xf32, #tpu.memory_space<vmem>>, %arg3: memref<16x32xf32, #tpu.memory_space<vmem>>, %arg4: memref<16x32xf32, #tpu.memory_space<vmem>>, %arg5: memref<16x1xf32, #tpu.memory_space<vmem>>) attributes {dimension_semantics = [#tpu.dimension_semantics<parallel>], iteration_bounds = array<i64: 1>, scalar_prefetch = 0 : i64, scratch_operands = 0 : i64, tpu.core_type = #tpu.core_type<tc>, window_params = [{transform_indices = @transform_0, window_bounds = array<i64: 16, 256>}, {transform_indices = @transform_1, window_bounds = array<i64: 16, 256>}, {transform_indices = @transform_2, window_bounds = array<i64: 16, 32>}, {transform_indices = @transform_3, window_bounds = array<i64: 16, 32>}, {transform_indices = @transform_4, window_bounds = array<i64: 16, 1>}]} {
    %c0 = arith.constant 0 : index
    %c0_0 = arith.constant 0 : index
    %0 = vector.load %arg1[%c0, %c0_0] : memref<16x256xf32, #tpu.memory_space<vmem>>, vector<16x256xf32>
    %c0_1 = arith.constant 0 : index
    %c0_2 = arith.constant 0 : index
    %1 = vector.load %arg2[%c0_1, %c0_2] : memref<16x256xf32, #tpu.memory_space<vmem>>, vector<16x256xf32>
    %cst = arith.constant 5.000000e-01 : f32
    %2 = vector.broadcast %cst : f32 to vector<16x256xf32>
    %3 = arith.cmpf ogt, %1, %2 : vector<16x256xf32>
    %cst_3 = arith.constant 1.000000e+00 : f32
    %4 = vector.broadcast %cst_3 : f32 to vector<16x256xf32>
    %5 = arith.subf %4, %0 : vector<16x256xf32>
    %6 = arith.select %3, %0, %5 : vector<16x256xi1>, vector<16x256xf32>
    %cst_4 = arith.constant 9.99999993E-9 : f32
    %7 = vector.broadcast %cst_4 : f32 to vector<16x256xf32>
    %8 = arith.addf %6, %7 : vector<16x256xf32>
    %9 = math.log %8 : vector<16x256xf32>
    %cst_5 = arith.constant dense<0.000000e+00> : vector<16xf32>
    %10 = vector.multi_reduction <add>, %9, %cst_5 [1] : vector<16x256xf32> to vector<16xf32>
    %11 = vector.shape_cast %10 : vector<16xf32> to vector<16x1xf32>
    %c0_6 = arith.constant 0 : index
    %c0_7 = arith.constant 0 : index
    %12 = vector.load %arg3[%c0_6, %c0_7] : memref<16x32xf32, #tpu.memory_space<vmem>>, vector<16x32xf32>
    %c0_8 = arith.constant 0 : index
    %c0_9 = arith.constant 0 : index
    %13 = vector.load %arg4[%c0_8, %c0_9] : memref<16x32xf32, #tpu.memory_space<vmem>>, vector<16x32xf32>
    %cst_10 = arith.constant 1.000000e+00 : f32
    %14 = vector.broadcast %cst_10 : f32 to vector<16x32xf32>
    %15 = arith.addf %14, %13 : vector<16x32xf32>
    %16 = arith.mulf %12, %12 : vector<16x32xf32>
    %17 = arith.subf %15, %16 : vector<16x32xf32>
    %18 = math.exp %13 : vector<16x32xf32>
    %19 = arith.subf %17, %18 : vector<16x32xf32>
    %cst_11 = arith.constant -5.000000e-01 : f32
    %20 = vector.broadcast %cst_11 : f32 to vector<16x32xf32>
    %21 = arith.mulf %20, %19 : vector<16x32xf32>
    %cst_12 = arith.constant dense<0.000000e+00> : vector<16xf32>
    %22 = vector.multi_reduction <add>, %21, %cst_12 [1] : vector<16x32xf32> to vector<16xf32>
    %23 = vector.shape_cast %22 : vector<16xf32> to vector<16x1xf32>
    %24 = arith.subf %11, %23 : vector<16x1xf32>
    %c0_13 = arith.constant 0 : index
    %c0_14 = arith.constant 0 : index
    %25 = vector.load %arg5[%c0_13, %c0_14] : memref<16x1xf32, #tpu.memory_space<vmem>>, vector<16x1xf32>
    tpu.vector_store %arg5[%c0_13, %c0_14], %24 {strides = array<i32>} : memref<16x1xf32, #tpu.memory_space<vmem>>, vector<16x1xf32>,
    return
  }
  func.func @transform_0(%arg0: i32) -> (i32, i32) {
    %c0_i32 = arith.constant 0 : i32
    %c0_i32_0 = arith.constant 0 : i32
    return %arg0, %c0_i32 : i32, i32
  }
  func.func @transform_1(%arg0: i32) -> (i32, i32) {
    %c0_i32 = arith.constant 0 : i32
    %c0_i32_0 = arith.constant 0 : i32
    return %arg0, %c0_i32 : i32, i32
  }
  func.func @transform_2(%arg0: i32) -> (i32, i32) {
    %c0_i32 = arith.constant 0 : i32
    %c0_i32_0 = arith.constant 0 : i32
    return %arg0, %c0_i32 : i32, i32
  }
  func.func @transform_3(%arg0: i32) -> (i32, i32) {
    %c0_i32 = arith.constant 0 : i32
    %c0_i32_0 = arith.constant 0 : i32
    return %arg0, %c0_i32 : i32, i32
  }
  func.func @transform_4(%arg0: i32) -> (i32, i32) {
    %c0_i32 = arith.constant 0 : i32
    %c0_i32_0 = arith.constant 0 : i32
    return %arg0, %c0_i32 : i32, i32
  }
}

</mosaic_0001>

<llo_original>
// kernel: tpu_custom_call.1
$region0: #{tpu_custom_call.1}
  #allocation0 [shape = 'u32[]', space=smem, size = 0x4, offset = 0x4, fixed_abs, tag = 'smem constant byte address 0x4 - core index']
  #allocation1 [shape = 'u32[144,128]{1,0:T(1,128)}', space=vmem, size = 0x12000, scoped, tag = 'internal scratch']
  %s0 = inlined_call_operand.hbm [shape: f32[16,256], index: 0, kind: input, shape index: {}]
  %s1 = inlined_call_operand.hbm [shape: f32[16,256], index: 1, kind: input, shape index: {}]
  %s2 = inlined_call_operand.hbm [shape: f32[16,32], index: 2, kind: input, shape index: {}]
  %s3 = inlined_call_operand.hbm [shape: f32[16,32], index: 3, kind: input, shape index: {}]
  %s4 = inlined_call_operand.vmem [shape: f32[16,1], index: 4, kind: output, shape index: {}]
  %s5 = sld [smem:[#allocation0]]
  $region42: #{tpu_custom_call.1} parent=0
    _
  %s7 = ssub.s32 1, %s5
  %s8 = scalar_select 0, %s7, %s5
  $region1: #{tpu_custom_call.1} parent=0
    #allocation2 [shape = 'u8[16384]{0}', space=vmem, size = 0x4000, scoped, tag = 'input window, operand 0, single buffered']
    #allocation3 [shape = 's32[1]{0}', space=sflag, size = 0x4, scoped, tag = 'scoped memory for tpu_custom_call.1']
    #allocation4 [shape = 'u8[16384]{0}', space=vmem, size = 0x4000, scoped, tag = 'input window, operand 1, single buffered']
    #allocation5 [shape = 's32[1]{0}', space=sflag, size = 0x4, scoped, tag = 'scoped memory for tpu_custom_call.1']
    #allocation6 [shape = 'u8[8192]{0}', space=vmem, size = 0x2000, scoped, tag = 'input window, operand 2, single buffered']
    #allocation7 [shape = 'u8[8192]{0}', space=vmem, size = 0x2000, scoped, tag = 'input window, operand 3, single buffered']
    #allocation8 [shape = 's32[1]{0}', space=sflag, size = 0x4, scoped, tag = 'scoped memory for tpu_custom_call.1']
    %9 = vsyncpa [#allocation3], 0
    %10 = vsyncpa [#allocation5], 0
    %11 = vsyncpa [#allocation8], 0
    // Predicated region
    $region2: #{tpu_custom_call.1} parent=1 // pred_check
      _
    $region3: #{tpu_custom_call.1} parent=1 // pred_check_branch
      %13 = sbr.rel (0) target = $region5
    $region4: #{tpu_custom_call.1} parent=1 // pred_region
      %s15 = ssub.s32 512, 512
      %16 = vsyncadd [#allocation3], %s15
      %s17 = sshll.u32 [#allocation2], 4
      %s18 = int_to_ptr.vmem [resolvable:$true] %s17
      %23 = dma.hbm_to_vmem [thread:$0]  %s0, 512, %s18, [#allocation3], 256, 256, 16
    $region5: #{tpu_custom_call.1} parent=1 // pred_fallthru
      _
    // Predicated region
    $region6: #{tpu_custom_call.1} parent=1 // pred_check
      _
    $region7: #{tpu_custom_call.1} parent=1 // pred_check_branch
      %25 = sbr.rel (0) target = $region9
    $region8: #{tpu_custom_call.1} parent=1 // pred_region
      %s27 = ssub.s32 512, 512
      %28 = vsyncadd [#allocation5], %s27
      %s29 = sshll.u32 [#allocation4], 4
      %s30 = int_to_ptr.vmem [resolvable:$true] %s29
      %35 = dma.hbm_to_vmem [thread:$0]  %s1, 512, %s30, [#allocation5], 256, 256, 16
    $region9: #{tpu_custom_call.1} parent=1 // pred_fallthru
      _
    // Predicated region
    $region10: #{tpu_custom_call.1} parent=1 // pred_check
      _
    $region11: #{tpu_custom_call.1} parent=1 // pred_check_branch
      %37 = sbr.rel (0) target = $region13
    $region12: #{tpu_custom_call.1} parent=1 // pred_region
      %s39 = ssub.s32 256, 256
      %40 = vsyncadd [#allocation5], %s39
      %s41 = sshll.u32 [#allocation6], 4
      %s42 = int_to_ptr.vmem [resolvable:$true] %s41
      %47 = dma.hbm_to_vmem [thread:$0]  %s2, 256, %s42, [#allocation5], 128, 128, 8
    $region13: #{tpu_custom_call.1} parent=1 // pred_fallthru
      _
    // Predicated region
    $region14: #{tpu_custom_call.1} parent=1 // pred_check
      _
    $region15: #{tpu_custom_call.1} parent=1 // pred_check_branch
      %49 = sbr.rel (0) target = $region17
    $region16: #{tpu_custom_call.1} parent=1 // pred_region
      %s51 = ssub.s32 256, 256
      %52 = vsyncadd [#allocation8], %s51
      %s53 = sshll.u32 [#allocation7], 4
      %s54 = int_to_ptr.vmem [resolvable:$true] %s53
      %59 = dma.hbm_to_vmem [thread:$0]  %s3, 256, %s54, [#allocation8], 128, 128, 8
    $region17: #{tpu_custom_call.1} parent=1 // pred_fallthru
      _
    // Predicated region
    $region18: #{tpu_custom_call.1} parent=1 // pred_check
      _
    $region19: #{tpu_custom_call.1} parent=1 // pred_check_branch
      %61 = sbr.rel (0) target = $region21
    $region20: #{tpu_custom_call.1} parent=1 // pred_region
      %62 = dma.done [#allocation3], 512
    $region21: #{tpu_custom_call.1} parent=1 // pred_fallthru
      _
    // Predicated region
    $region22: #{tpu_custom_call.1} parent=1 // pred_check
      _
    $region23: #{tpu_custom_call.1} parent=1 // pred_check_branch
      %64 = sbr.rel (0) target = $region25
    $region24: #{tpu_custom_call.1} parent=1 // pred_region
      %65 = dma.done [#allocation5], 512
    $region25: #{tpu_custom_call.1} parent=1 // pred_fallthru
      _
    // Predicated region
    $region26: #{tpu_custom_call.1} parent=1 // pred_check
      _
    $region27: #{tpu_custom_call.1} parent=1 // pred_check_branch
      %67 = sbr.rel (0) target = $region29
    $region28: #{tpu_custom_call.1} parent=1 // pred_region
      %68 = dma.done [#allocation5], 256
    $region29: #{tpu_custom_call.1} parent=1 // pred_fallthru
      _
    // Predicated region
    $region30: #{tpu_custom_call.1} parent=1 // pred_check
      _
    $region31: #{tpu_custom_call.1} parent=1 // pred_check_branch
      %70 = sbr.rel (0) target = $region33
    $region32: #{tpu_custom_call.1} parent=1 // pred_region
      %71 = dma.done [#allocation8], 256
    $region33: #{tpu_custom_call.1} parent=1 // pred_fallthru
      _
    %v72 = vld [vmem:[#allocation2] sm:$0xff]
    %v73 = vld [vmem:[#allocation2 + $0x8] sm:$0xff]
    %v74 = vld [vmem:[#allocation2 + $0x10] sm:$0xff]
    %v75 = vld [vmem:[#allocation2 + $0x18] sm:$0xff]
    %v76 = vld [vmem:[#allocation4] sm:$0xff]
    %v77 = vld [vmem:[#allocation4 + $0x8] sm:$0xff]
    %v78 = vld [vmem:[#allocation4 + $0x10] sm:$0xff]
    %v79 = vld [vmem:[#allocation4 + $0x18] sm:$0xff]
    %vm80 = vcmp.gt.f32.partialorder %v76, 0.5
    %vm81 = vcmp.gt.f32.partialorder %v77, 0.5
    %vm82 = vcmp.gt.f32.partialorder %v78, 0.5
    %vm83 = vcmp.gt.f32.partialorder %v79, 0.5
    %v84 = vsub.f32 1.0, %v72
    %v85 = vsub.f32 1.0, %v73
    %v86 = vsub.f32 1.0, %v74
    %v87 = vsub.f32 1.0, %v75
    %v88 = vsel %vm80, %v72, %v84
    %v89 = vsel %vm81, %v73, %v85
    %v90 = vsel %vm82, %v74, %v86
    %v91 = vsel %vm83, %v75, %v87
    %v92 = vadd.f32 %v88, 1e-08
    %v93 = vadd.f32 %v89, 1e-08
    %v94 = vadd.f32 %v90, 1e-08
    %v95 = vadd.f32 %v91, 1e-08
    %v96 = vlog2.pop %v92
    %v97 = vmul.f32 %v96, 0.6931472
    %v98 = vlog2.pop %v93
    %v99 = vmul.f32 %v98, 0.6931472
    %v100 = vlog2.pop %v94
    %v101 = vmul.f32 %v100, 0.6931472
    %v102 = vlog2.pop %v95
    %v103 = vmul.f32 %v102, 0.6931472
    %v104 = vadd.f32 %v97, %v99
    %105 = vadd.xlane.f32.xlu0 %v104
    %v106 = vpop.xlane.xlu0 %105
    %v107 = vadd.f32 %v101, %v103
    %108 = vadd.xlane.f32.xlu0 %v107
    %v109 = vpop.xlane.xlu0 %108
    %v110 = vld [vmem:[#allocation6] sm:$0xff]
    %v111 = vld [vmem:[#allocation6 + $0x8] sm:$0xff]
    %v112 = vld [vmem:[#allocation7] sm:$0xff]
    %v113 = vld [vmem:[#allocation7 + $0x8] sm:$0xff]
    %v114 = vadd.f32 %v112, 1.0
    %v115 = vadd.f32 %v113, 1.0
    %v116 = vmul.f32 %v110, %v110
    %v117 = vmul.f32 %v111, %v111
    %v118 = vsub.f32 %v114, %v116
    %v119 = vsub.f32 %v115, %v117
    %v120 = vmul.f32 %v112, 1.442695
    %v121 = vpow.pop %v120
    %v122 = vmul.f32 %v113, 1.442695
    %v123 = vpow.pop %v122
    %v124 = vsub.f32 %v118, %v121
    %v125 = vsub.f32 %v119, %v123
    %v126 = vmul.f32 %v124, -0.5
    %v127 = vmul.f32 %v125, -0.5
    %vm128 = vcmask 261120
    %v129 = vsel %vm128, %v126, 0.0
    %130 = vadd.xlane.f32.xlu0 %v129
    %v131 = vpop.xlane.xlu0 %130
    %v132 = vsel %vm128, %v127, 0.0
    %133 = vadd.xlane.f32.xlu0 %v132
    %v134 = vpop.xlane.xlu0 %133
    %v135 = vsub.f32 %v106, %v131
    %v136 = vsub.f32 %v109, %v134
    %vm137 = vcmask 7168
    %138 = vst.msk [vmem:[%s4] sm:$0xff] %vm137, %v135
    %139 = vst.msk [vmem:[%s4 + $0x8] sm:$0xff] %vm137, %v136
    // Predicated region
    $region34: #{tpu_custom_call.1} parent=1 // pred_check
      _
    $region35: #{tpu_custom_call.1} parent=1 // pred_check_branch
      %141 = sbr.rel (0) target = $region37
    $region36: #{tpu_custom_call.1} parent=1 // pred_region
      _
    $region37: #{tpu_custom_call.1} parent=1 // pred_fallthru
      _
    // Predicated region
    $region38: #{tpu_custom_call.1} parent=1 // pred_check
      _
    $region39: #{tpu_custom_call.1} parent=1 // pred_check_branch
      %143 = sbr.rel (0) target = $region41
    $region40: #{tpu_custom_call.1} parent=1 // pred_region
      _
    $region41: #{tpu_custom_call.1} parent=1 // pred_fallthru
      _
    %144 = vsyncpa [#allocation3], 1
    %145 = vsyncpa [#allocation5], 1
    %146 = vsyncpa [#allocation8], 1

</llo_original>
